<compile_context>
chip_gen: v6e
topology: v6e:2x2x1
jax: 0.10.0
libtpu: 0.0.40
codegen_flags: <defaults>
</compile_context>

<pallas_src>
import functools
import math

import jax
import jax.numpy as jnp
from jax.experimental import pallas as pl
from jax.experimental.pallas import tpu as pltpu


def _vmem_budget_and_limit():
    """Generation-aware scoped-VMEM limit and per-step working-set budget."""
    try:
        cap = int(pltpu.get_tpu_info().vmem_capacity_bytes)
    except Exception:
        cap = 64 * 1024 * 1024  # conservative (v7x-sized) fallback
    limit = min(cap * 3 // 4, 96 * 1024 * 1024)   # leave compiler headroom
    budget = limit * 3 // 4
    return budget, limit


def _round_down(v: int, m: int) -> int:
    return max(m, (v // m) * m)


def _fused_mlp_kernel(x_ref, wn_ref, w1_ref, w3_ref, w2_ref, o_ref,
                      h_ref, acc_ref, *, eps: float):
    """RMSNorm + gate/up matmuls + SiLU*gate + down-projection accumulate."""
    j = pl.program_id(1)

    @pl.when(j == 0)
    def _():
        # RMSNorm computed once per row block, cached in VMEM scratch.
        x = x_ref[...].astype(jnp.float32)
        ms = jnp.mean(x * x, axis=-1, keepdims=True)
        xn = (x * jax.lax.rsqrt(ms + eps)).astype(x_ref.dtype)      # .type_as(x)
        h_ref[...] = (xn.astype(jnp.float32) * wn_ref[...]).astype(h_ref.dtype)
        acc_ref[...] = jnp.zeros_like(acc_ref)

    h = h_ref[...]
    g = jnp.dot(h, w1_ref[...], preferred_element_type=jnp.float32)   # (bm, bn)
    u = jnp.dot(h, w3_ref[...], preferred_element_type=jnp.float32)   # (bm, bn)
    act = (g * jax.nn.sigmoid(g) * u).astype(x_ref.dtype)             # silu(g)*u
    acc_ref[...] += jnp.dot(act, w2_ref[...], preferred_element_type=jnp.float32)

    @pl.when(j == pl.num_programs(1) - 1)
    def _():
        o_ref[...] = acc_ref[...].astype(o_ref.dtype)


def mlp_decoder_layer(x, norm_weight, w1, w3, w2, eps: float = 1e-6):
    """Forward of MLPDecoderLayer.

    x:           (..., H)
    norm_weight: (H,)        -- RMSNorm gain
    w1, w3:      (H, I)      -- gate / up projections (= torch Linear.weight.T)
    w2:          (I, H)      -- down projection       (= torch Linear.weight.T)
    """
    orig_shape = x.shape
    hidden = orig_shape[-1]
    inter = w1.shape[1]
    assert norm_weight.shape == (hidden,)
    assert w1.shape == (hidden, inter)
    assert w3.shape == (hidden, inter)
    assert w2.shape == (inter, hidden)

    rows = math.prod(orig_shape[:-1])
    x2d = x.reshape(rows, hidden)
    wn2d = norm_weight.reshape(1, hidden).astype(jnp.float32)

    x_item = jnp.dtype(x.dtype).itemsize
    w_item = jnp.dtype(w1.dtype).itemsize
    row_mult = 8 if x_item >= 4 else 16          # sublane granule (16 for bf16)
    budget, limit = _vmem_budget_and_limit()

    def working_set(bm, bn):
        x_io = 2 * bm * hidden * x_item                  # x tile (double buffer)
        w13_io = 2 * 2 * hidden * bn * w_item            # w1 + w3 tiles
        w2_io = 2 * bn * hidden * w_item                 # w2 tile
        out_io = 2 * bm * hidden * x_item                # output tile
        h_s = bm * hidden * x_item                       # cached RMSNorm(x)
        acc_s = bm * hidden * 4                          # f32 accumulator
        tmp = max(bm * hidden * 4, 2 * bm * bn * 4)      # f32 intermediates
        return x_io + w13_io + w2_io + out_io + h_s + acc_s + tmp + hidden * 4

    # Prefer a large row block (each row block re-streams all three weight
    # matrices), then shrink the intermediate block (only per-step overhead).
    block_m = rows if rows <= 512 else _round_down(512, row_mult)
    block_n = inter if inter <= 512 else _round_down(512, 128)
    while working_set(block_m, block_n) > budget and block_n > 128:
        block_n = _round_down(block_n // 2, 128)
    while working_set(block_m, block_n) > budget and block_m > row_mult:
        block_m = _round_down(block_m // 2, row_mult)

    grid_m = pl.cdiv(rows, block_m)        # partial row blocks masked on store
    grid_j = pl.cdiv(inter, block_n)
    inter_pad = grid_j * block_n
    if inter_pad != inter:
        # Zero-pad the reduction dim: padded gate/up cols give act == 0 and
        # padded w2 rows contribute 0, so the accumulation stays exact.
        pad = inter_pad - inter
        w1 = jnp.pad(w1, ((0, 0), (0, pad)))
        w3 = jnp.pad(w3, ((0, 0), (0, pad)))
        w2 = jnp.pad(w2, ((0, pad), (0, 0)))

    out2d = pl.pallas_call(
        functools.partial(_fused_mlp_kernel, eps=eps),
        out_shape=jax.ShapeDtypeStruct((rows, hidden), x.dtype),
        grid=(grid_m, grid_j),
        in_specs=[
            pl.BlockSpec((block_m, hidden), lambda i, j: (i, 0)),    # x
            pl.BlockSpec((1, hidden), lambda i, j: (0, 0)),          # norm weight
            pl.BlockSpec((hidden, block_n), lambda i, j: (0, j)),    # w1
            pl.BlockSpec((hidden, block_n), lambda i, j: (0, j)),    # w3
            pl.BlockSpec((block_n, hidden), lambda i, j: (j, 0)),    # w2
        ],
        out_specs=pl.BlockSpec((block_m, hidden), lambda i, j: (i, 0)),
        scratch_shapes=[
            pltpu.VMEM((block_m, hidden), x.dtype),       # cached RMSNorm(x)
            pltpu.VMEM((block_m, hidden), jnp.float32),   # output accumulator
        ],
        compiler_params=pltpu.CompilerParams(
            dimension_semantics=("parallel", "arbitrary"),
            vmem_limit_bytes=limit,
        ),
    )(x2d, wn2d, w1, w3, w2)

    return out2d.reshape(orig_shape)


def mlp_decoder_layer_ref(x, norm_weight, w1, w3, w2, eps: float = 1e-6):
    xf = x.astype(jnp.float32)
    ms = jnp.mean(xf * xf, axis=-1, keepdims=True)
    xn = (xf * jax.lax.rsqrt(ms + eps)).astype(x.dtype)          # .type_as(x)
    h = (xn.astype(jnp.float32) * norm_weight.astype(jnp.float32)).astype(x.dtype)
    g = jnp.dot(h, w1, preferred_element_type=jnp.float32)
    u = jnp.dot(h, w3, preferred_element_type=jnp.float32)
    act = (jax.nn.silu(g) * u).astype(x.dtype)
    return jnp.dot(act, w2, preferred_element_type=jnp.float32).astype(x.dtype)


if __name__ == "__main__":
    # Small shapes consistent with the module: (batch, seq, hidden) -> SwiGLU MLP.
    batch, seq, hidden, intermediate = 2, 8, 128, 256
    key = jax.random.PRNGKey(0)
    kx, k1, k2, k3 = jax.random.split(key, 4)

    x = jax.random.normal(kx, (batch, seq, hidden), dtype=jnp.float32)
    norm_weight = jnp.ones((hidden,), dtype=jnp.float32)   # nn.Parameter(torch.ones(dim))
    # Linear weights stored pre-transposed relative to torch (Linear.weight.T).
    w1 = 0.02 * jax.random.normal(k1, (hidden, intermediate), dtype=jnp.float32)
    w3 = 0.02 * jax.random.normal(k3, (hidden, intermediate), dtype=jnp.float32)
    w2 = 0.02 * jax.random.normal(k2, (intermediate, hidden), dtype=jnp.float32)

    out = mlp_decoder_layer(x, norm_weight, w1, w3, w2, eps=1e-6)
    out = jax.block_until_ready(out)

    ref = mlp_decoder_layer_ref(x, norm_weight, w1, w3, w2, eps=1e-6)
    assert out.shape == (batch, seq, hidden)
    assert jnp.allclose(out, ref, atol=2e-3, rtol=2e-3), float(jnp.max(jnp.abs(out - ref)))

    # TODO(synk): FSDP / tensor-parallel sharding, checkpoint wrapping and the
    # optimizer in the original script are distributed-training concerns, not
    # part of the single-device forward math implemented here.
    print("KERNEL_OK")
</pallas_src>

<mosaic_0001>
module attributes {stable_mosaic.version = 11 : i64} {
  func.func @_fused_mlp_kernel(%arg0: i32, %arg1: i32, %arg2: memref<16x128xf32, #tpu.memory_space<vmem>>, %arg3: memref<1x128xf32, #tpu.memory_space<vmem>>, %arg4: memref<128x256xf32, #tpu.memory_space<vmem>>, %arg5: memref<128x256xf32, #tpu.memory_space<vmem>>, %arg6: memref<256x128xf32, #tpu.memory_space<vmem>>, %arg7: memref<16x128xf32, #tpu.memory_space<vmem>>, %arg8: memref<16x128xf32, #tpu.memory_space<vmem>>, %arg9: memref<16x128xf32, #tpu.memory_space<vmem>>) attributes {dimension_semantics = [#tpu.dimension_semantics<parallel>, #tpu.dimension_semantics<arbitrary>], iteration_bounds = array<i64: 1, 1>, scalar_prefetch = 0 : i64, scratch_operands = 2 : i64, tpu.core_type = #tpu.core_type<tc>, window_params = [{transform_indices = @transform_0, window_bounds = array<i64: 16, 128>}, {pipeline_mode = #tpu.pipeline_mode<synchronous>, transform_indices = @transform_1, window_bounds = array<i64: 1, 128>}, {transform_indices = @transform_2, window_bounds = array<i64: 128, 256>}, {transform_indices = @transform_3, window_bounds = array<i64: 128, 256>}, {transform_indices = @transform_4, window_bounds = array<i64: 256, 128>}, {transform_indices = @transform_5, window_bounds = array<i64: 16, 128>}]} {
    %c0_i32 = arith.constant 0 : i32
    %0 = arith.cmpi eq, %arg1, %c0_i32 : i32
    %1 = arith.extui %0 : i1 to i32
    %c0_i32_0 = arith.constant 0 : i32
    %2 = arith.cmpi ne, %1, %c0_i32_0 : i32
    scf.if %2 {
      %c0_17 = arith.constant 0 : index
      %c0_18 = arith.constant 0 : index
      %23 = vector.load %arg2[%c0_17, %c0_18] : memref<16x128xf32, #tpu.memory_space<vmem>>, vector<16x128xf32>
      %24 = arith.mulf %23, %23 : vector<16x128xf32>
      %cst_19 = arith.constant dense<0.000000e+00> : vector<16xf32>
      %25 = vector.multi_reduction <add>, %24, %cst_19 [1] : vector<16x128xf32> to vector<16xf32>
      %26 = vector.shape_cast %25 : vector<16xf32> to vector<16x1xf32>
      %cst_20 = arith.constant 1.280000e+02 : f32
      %27 = vector.broadcast %cst_20 : f32 to vector<16x1xf32>
      %28 = arith.divf %26, %27 : vector<16x1xf32>
      %cst_21 = arith.constant 9.99999997E-7 : f32
      %29 = vector.broadcast %cst_21 : f32 to vector<16x1xf32>
      %30 = arith.addf %28, %29 : vector<16x1xf32>
      %31 = math.rsqrt %30 : vector<16x1xf32>
      %32 = vector.broadcast %31 : vector<16x1xf32> to vector<16x128xf32>
      %33 = arith.mulf %23, %32 : vector<16x128xf32>
      %c0_22 = arith.constant 0 : index
      %c0_23 = arith.constant 0 : index
      %34 = vector.load %arg3[%c0_22, %c0_23] : memref<1x128xf32, #tpu.memory_space<vmem>>, vector<1x128xf32>
      %35 = vector.broadcast %34 : vector<1x128xf32> to vector<16x128xf32>
      %36 = arith.mulf %33, %35 : vector<16x128xf32>
      %c0_24 = arith.constant 0 : index
      %c0_25 = arith.constant 0 : index
      %37 = vector.load %arg8[%c0_24, %c0_25] : memref<16x128xf32, #tpu.memory_space<vmem>>, vector<16x128xf32>
      tpu.vector_store %arg8[%c0_24, %c0_25], %36 {strides = array<i32>} : memref<16x128xf32, #tpu.memory_space<vmem>>, vector<16x128xf32>,
      %cst_26 = arith.constant 0.000000e+00 : f32
      %38 = vector.broadcast %cst_26 : f32 to vector<16x128xf32>
      %c0_27 = arith.constant 0 : index
      %c0_28 = arith.constant 0 : index
      %39 = vector.load %arg9[%c0_27, %c0_28] : memref<16x128xf32, #tpu.memory_space<vmem>>, vector<16x128xf32>
      tpu.vector_store %arg9[%c0_27, %c0_28], %38 {strides = array<i32>} : memref<16x128xf32, #tpu.memory_space<vmem>>, vector<16x128xf32>,
    } else {
    }
    %c0 = arith.constant 0 : index
    %c0_1 = arith.constant 0 : index
    %3 = vector.load %arg8[%c0, %c0_1] : memref<16x128xf32, #tpu.memory_space<vmem>>, vector<16x128xf32>
    %c0_2 = arith.constant 0 : index
    %c0_3 = arith.constant 0 : index
    %4 = vector.load %arg4[%c0_2, %c0_3] : memref<128x256xf32, #tpu.memory_space<vmem>>, vector<128x256xf32>
    %cst = arith.constant dense<0.000000e+00> : vector<16x256xf32>
    %5 = tpu.matmul %3, %4, %cst {dimension_numbers = #tpu.dot_dimension_numbers<[1], [0], [0], [1], [0, 0, 1, 1], [], []>} : vector<16x128xf32>, vector<128x256xf32>, vector<16x256xf32> -> vector<16x256xf32>
    %c0_4 = arith.constant 0 : index
    %c0_5 = arith.constant 0 : index
    %6 = vector.load %arg5[%c0_4, %c0_5] : memref<128x256xf32, #tpu.memory_space<vmem>>, vector<128x256xf32>
    %cst_6 = arith.constant dense<0.000000e+00> : vector<16x256xf32>
    %7 = tpu.matmul %3, %6, %cst_6 {dimension_numbers = #tpu.dot_dimension_numbers<[1], [0], [0], [1], [0, 0, 1, 1], [], []>} : vector<16x128xf32>, vector<128x256xf32>, vector<16x256xf32> -> vector<16x256xf32>
    %8 = arith.negf %5 : vector<16x256xf32>
    %9 = math.exp %8 : vector<16x256xf32>
    %cst_7 = arith.constant 1.000000e+00 : f32
    %10 = vector.broadcast %cst_7 : f32 to vector<16x256xf32>
    %11 = arith.addf %10, %9 : vector<16x256xf32>
    %12 = arith.divf %10, %11 : vector<16x256xf32>
    %13 = arith.mulf %5, %12 : vector<16x256xf32>
    %14 = arith.mulf %13, %7 : vector<16x256xf32>
    %c0_8 = arith.constant 0 : index
    %c0_9 = arith.constant 0 : index
    %15 = vector.load %arg9[%c0_8, %c0_9] : memref<16x128xf32, #tpu.memory_space<vmem>>, vector<16x128xf32>
    %c0_10 = arith.constant 0 : index
    %c0_11 = arith.constant 0 : index
    %16 = vector.load %arg6[%c0_10, %c0_11] : memref<256x128xf32, #tpu.memory_space<vmem>>, vector<256x128xf32>
    %cst_12 = arith.constant dense<0.000000e+00> : vector<16x128xf32>
    %17 = tpu.matmul %14, %16, %cst_12 {dimension_numbers = #tpu.dot_dimension_numbers<[1], [0], [0], [1], [0, 0, 1, 1], [], []>} : vector<16x256xf32>, vector<256x128xf32>, vector<16x128xf32> -> vector<16x128xf32>
    %18 = arith.addf %15, %17 : vector<16x128xf32>
    %c0_13 = arith.constant 0 : index
    %c0_14 = arith.constant 0 : index
    %19 = vector.load %arg9[%c0_13, %c0_14] : memref<16x128xf32, #tpu.memory_space<vmem>>, vector<16x128xf32>
    tpu.vector_store %arg9[%c0_13, %c0_14], %18 {strides = array<i32>} : memref<16x128xf32, #tpu.memory_space<vmem>>, vector<16x128xf32>,
    %c0_i32_15 = arith.constant 0 : i32
    %20 = arith.cmpi eq, %arg1, %c0_i32_15 : i32
    %21 = arith.extui %20 : i1 to i32
    %c0_i32_16 = arith.constant 0 : i32
    %22 = arith.cmpi ne, %21, %c0_i32_16 : i32
    scf.if %22 {
      %c0_17 = arith.constant 0 : index
      %c0_18 = arith.constant 0 : index
      %23 = vector.load %arg9[%c0_17, %c0_18] : memref<16x128xf32, #tpu.memory_space<vmem>>, vector<16x128xf32>
      %c0_19 = arith.constant 0 : index
      %c0_20 = arith.constant 0 : index
      %24 = vector.load %arg7[%c0_19, %c0_20] : memref<16x128xf32, #tpu.memory_space<vmem>>, vector<16x128xf32>
      tpu.vector_store %arg7[%c0_19, %c0_20], %23 {strides = array<i32>} : memref<16x128xf32, #tpu.memory_space<vmem>>, vector<16x128xf32>,
    } else {
    }
    return
  }
  func.func @transform_0(%arg0: i32, %arg1: i32) -> (i32, i32) {
    %c0_i32 = arith.constant 0 : i32
    %c0_i32_0 = arith.constant 0 : i32
    return %arg0, %c0_i32 : i32, i32
  }
  func.func @transform_1(%arg0: i32, %arg1: i32) -> (i32, i32) {
    %c0_i32 = arith.constant 0 : i32
    %c0_i32_0 = arith.constant 0 : i32
    %c0_i32_1 = arith.constant 0 : i32
    return %c0_i32, %c0_i32_0 : i32, i32
  }
  func.func @transform_2(%arg0: i32, %arg1: i32) -> (i32, i32) {
    %c0_i32 = arith.constant 0 : i32
    %c0_i32_0 = arith.constant 0 : i32
    return %c0_i32, %arg1 : i32, i32
  }
  func.func @transform_3(%arg0: i32, %arg1: i32) -> (i32, i32) {
    %c0_i32 = arith.constant 0 : i32
    %c0_i32_0 = arith.constant 0 : i32
    return %c0_i32, %arg1 : i32, i32
  }
  func.func @transform_4(%arg0: i32, %arg1: i32) -> (i32, i32) {
    %c0_i32 = arith.constant 0 : i32
    %c0_i32_0 = arith.constant 0 : i32
    return %arg1, %c0_i32 : i32, i32
  }
  func.func @transform_5(%arg0: i32, %arg1: i32) -> (i32, i32) {
    %c0_i32 = arith.constant 0 : i32
    %c0_i32_0 = arith.constant 0 : i32
    return %arg0, %c0_i32 : i32, i32
  }
}

</mosaic_0001>

<llo_original>
// kernel: tpu_custom_call.1
$region0: #{tpu_custom_call.1}
  #allocation0 [shape = 'u32[]', space=smem, size = 0x4, offset = 0x4, fixed_abs, tag = 'smem constant byte address 0x4 - core index']
  #allocation1 [shape = 'u32[144,128]{1,0:T(1,128)}', space=vmem, size = 0x12000, scoped, tag = 'internal scratch']
  #allocation2 [shape = 'f32[16,128]{1,0:T(8,128)}', space=vmem, size = 0x2000, scoped, tag = 'scratch operand']
  #allocation3 [shape = 'f32[16,128]{1,0:T(8,128)}', space=vmem, size = 0x2000, scoped, tag = 'scratch operand']
  %s0 = inlined_call_operand.hbm [shape: f32[16,128], index: 0, kind: input, shape index: {}]
  %s1 = inlined_call_operand.vmem [shape: f32[1,128], index: 1, kind: input, shape index: {}]
  %s2 = inlined_call_operand.hbm [shape: f32[128,256], index: 2, kind: input, shape index: {}]
  %s3 = inlined_call_operand.hbm [shape: f32[128,256], index: 3, kind: input, shape index: {}]
  %s4 = inlined_call_operand.hbm [shape: f32[256,128], index: 4, kind: input, shape index: {}]
  %s5 = inlined_call_operand.hbm [shape: f32[16,128], index: 5, kind: output, shape index: {}]
  %s6 = sld [smem:[#allocation0]]
  $region54: #{tpu_custom_call.1} parent=0
    _
  %s8 = ssub.s32 1, %s6
  %s9 = scalar_select 0, %s8, %s6
  $region1: #{tpu_custom_call.1} parent=0
    #allocation4 [shape = 'u8[8192]{0}', space=vmem, size = 0x2000, scoped, tag = 'input window, operand 0, single buffered']
    #allocation5 [shape = 's32[1]{0}', space=sflag, size = 0x4, scoped, tag = 'scoped memory for tpu_custom_call.1']
    #allocation6 [shape = 's32[1]{0}', space=sflag, size = 0x4, scoped, tag = 'scoped memory for tpu_custom_call.1']
    #allocation7 [shape = 'u8[131072]{0}', space=vmem, size = 0x20000, scoped, tag = 'input window, operand 2, single buffered']
    #allocation8 [shape = 's32[1]{0}', space=sflag, size = 0x4, scoped, tag = 'scoped memory for tpu_custom_call.1']
    #allocation9 [shape = 'u8[131072]{0}', space=vmem, size = 0x20000, scoped, tag = 'input window, operand 3, single buffered']
    #allocation10 [shape = 'u8[131072]{0}', space=vmem, size = 0x20000, scoped, tag = 'input window, operand 4, single buffered']
    #allocation11 [shape = 's32[1]{0}', space=sflag, size = 0x4, scoped, tag = 'scoped memory for tpu_custom_call.1']
    #allocation12 [shape = 'u8[8192]{0}', space=vmem, size = 0x2000, scoped, tag = 'output window, operand 0, single buffered']
    %10 = vsyncpa [#allocation5], 0
    %11 = vsyncpa [#allocation8], 0
    %12 = vsyncpa [#allocation11], 0
    %13 = vsyncpa [#allocation6], 0
    // Predicated region
    $region2: #{tpu_custom_call.1} parent=1 // pred_check
      _
    $region3: #{tpu_custom_call.1} parent=1 // pred_check_branch
      %15 = sbr.rel (0) target = $region5
    $region4: #{tpu_custom_call.1} parent=1 // pred_region
      %s17 = ssub.s32 256, 256
      %18 = vsyncadd [#allocation5], %s17
      %s19 = sshll.u32 [#allocation4], 4
      %s20 = int_to_ptr.vmem [resolvable:$true] %s19
      %25 = dma.hbm_to_vmem [thread:$0]  %s0, 256, %s20, [#allocation5], 128, 128, 8
    $region5: #{tpu_custom_call.1} parent=1 // pred_fallthru
      _
    // Predicated region
    $region6: #{tpu_custom_call.1} parent=1 // pred_check
      _
    $region7: #{tpu_custom_call.1} parent=1 // pred_check_branch
      %27 = sbr.rel (0) target = $region9
    $region8: #{tpu_custom_call.1} parent=1 // pred_region
      _
    $region9: #{tpu_custom_call.1} parent=1 // pred_fallthru
      _
    // Predicated region
    $region10: #{tpu_custom_call.1} parent=1 // pred_check
      _
    $region11: #{tpu_custom_call.1} parent=1 // pred_check_branch
      %29 = sbr.rel (0) target = $region13
    $region12: #{tpu_custom_call.1} parent=1 // pred_region
      %s31 = ssub.s32 4096, 4096
      %32 = vsyncadd [#allocation8], %s31
      %s33 = sshll.u32 [#allocation7], 4
      %s34 = int_to_ptr.vmem [resolvable:$true] %s33
      %39 = dma.hbm_to_vmem [thread:$0]  %s2, 4096, %s34, [#allocation8], 256, 256, 16
    $region13: #{tpu_custom_call.1} parent=1 // pred_fallthru
      _
    // Predicated region
    $region14: #{tpu_custom_call.1} parent=1 // pred_check
      _
    $region15: #{tpu_custom_call.1} parent=1 // pred_check_branch
      %41 = sbr.rel (0) target = $region17
    $region16: #{tpu_custom_call.1} parent=1 // pred_region
      %s43 = ssub.s32 4096, 4096
      %44 = vsyncadd [#allocation8], %s43
      %s45 = sshll.u32 [#allocation9], 4
      %s46 = int_to_ptr.vmem [resolvable:$true] %s45
      %51 = dma.hbm_to_vmem [thread:$0]  %s3, 4096, %s46, [#allocation8], 256, 256, 16
    $region17: #{tpu_custom_call.1} parent=1 // pred_fallthru
      _
    // Predicated region
    $region18: #{tpu_custom_call.1} parent=1 // pred_check
      _
    $region19: #{tpu_custom_call.1} parent=1 // pred_check_branch
      %53 = sbr.rel (0) target = $region21
    $region20: #{tpu_custom_call.1} parent=1 // pred_region
      %s55 = ssub.s32 4096, 4096
      %56 = vsyncadd [#allocation11], %s55
      %s57 = sshll.u32 [#allocation10], 4
      %s58 = int_to_ptr.vmem [resolvable:$true] %s57
      %63 = dma.hbm_to_vmem [thread:$0]  %s4, 4096, %s58, [#allocation11], 128, 128, 8
    $region21: #{tpu_custom_call.1} parent=1 // pred_fallthru
      _
    // Predicated region
    $region22: #{tpu_custom_call.1} parent=1 // pred_check
      _
    $region23: #{tpu_custom_call.1} parent=1 // pred_check_branch
      %65 = sbr.rel (0) target = $region25
    $region24: #{tpu_custom_call.1} parent=1 // pred_region
      %66 = dma.done [#allocation5], 256
    $region25: #{tpu_custom_call.1} parent=1 // pred_fallthru
      _
    // Predicated region
    $region26: #{tpu_custom_call.1} parent=1 // pred_check
      _
    $region27: #{tpu_custom_call.1} parent=1 // pred_check_branch
      %68 = sbr.rel (0) target = $region29
    $region28: #{tpu_custom_call.1} parent=1 // pred_region
      %69 = dma.done [#allocation8], 4096
    $region29: #{tpu_custom_call.1} parent=1 // pred_fallthru
      _
    // Predicated region
    $region30: #{tpu_custom_call.1} parent=1 // pred_check
      _
    $region31: #{tpu_custom_call.1} parent=1 // pred_check_branch
      %71 = sbr.rel (0) target = $region33
    $region32: #{tpu_custom_call.1} parent=1 // pred_region
      %72 = dma.done [#allocation8], 4096
    $region33: #{tpu_custom_call.1} parent=1 // pred_fallthru
      _
    // Predicated region
    $region34: #{tpu_custom_call.1} parent=1 // pred_check
      _
    $region35: #{tpu_custom_call.1} parent=1 // pred_check_branch
      %74 = sbr.rel (0) target = $region37
    $region36: #{tpu_custom_call.1} parent=1 // pred_region
      %75 = dma.done [#allocation11], 4096
    $region37: #{tpu_custom_call.1} parent=1 // pred_fallthru
      _
    %p76 = scmp.eq.s32.totalorder 0, 0
    // Predicated region
    $region38: #{tpu_custom_call.1} parent=1 // pred_check
      %p77 = pneg %p76
    $region39: #{tpu_custom_call.1} parent=1 // pred_check_branch
      %79 = sbr.rel (%p77) target = $region41
    $region40: #{tpu_custom_call.1} parent=1 // pred_region
      %v80 = vld [vmem:[#allocation4] sm:$0xff]
      %v81 = vld [vmem:[#allocation4 + $0x8] sm:$0xff]
      %v82 = vmul.f32 %v80, %v80
      %v83 = vmul.f32 %v81, %v81
      %84 = vadd.xlane.f32.xlu0 %v82
      %v85 = vpop.xlane.xlu0 %84
      %86 = vadd.xlane.f32.xlu0 %v83
      %v87 = vpop.xlane.xlu0 %86
      %v88 = vrcp.pop 128.0
      %v89 = vmul.f32 %v85, %v88
      %v90 = vmul.f32 %v87, %v88
      %v91 = vadd.f32 %v89, 1e-06
      %v92 = vadd.f32 %v90, 1e-06
      %v93 = vrsqrt.pop %v91
      %v94 = vrsqrt.pop %v92
      %v95 = vmul.f32 %v80, %v93
      %v96 = vmul.f32 %v81, %v94
      %v97 = vld [vmem:[%s1] sm:$0x1]
      %v99 = vlaneseq
      %v100 = vshrl.u32 %v99, 7
      %v101 = vsub.s32 0, %v100
      %v102 = vrot.slane %v97, %v101
      %v104 = vmul.f32 %v95, %v102
      %v105 = vmul.f32 %v96, %v102
      %106 = vst [vmem:[#allocation2] sm:$0xff] %v104
      %107 = vst [vmem:[#allocation2 + $0x8] sm:$0xff] %v105
      %108 = vst [vmem:[#allocation3] sm:$0xff] 0.0
      %109 = vst [vmem:[#allocation3 + $0x8] sm:$0xff] 0.0
    $region41: #{tpu_custom_call.1} parent=1 // pred_fallthru
      _
    %v110 = vld [vmem:[#allocation2] sm:$0xff]
    %v111 = vld [vmem:[#allocation2 + $0x8] sm:$0xff]
    %v112 = vld [vmem:[#allocation7] sm:$0xff]
    %v113 = vld [vmem:[#allocation7 + $0x8] sm:$0xff]
    %v114 = vld [vmem:[#allocation7 + $0x10] sm:$0xff]
    %v115 = vld [vmem:[#allocation7 + $0x18] sm:$0xff]
    %v116 = vld [vmem:[#allocation7 + $0x20] sm:$0xff]
    %v117 = vld [vmem:[#allocation7 + $0x28] sm:$0xff]
    %v118 = vld [vmem:[#allocation7 + $0x30] sm:$0xff]
    %v119 = vld [vmem:[#allocation7 + $0x38] sm:$0xff]
    %v120 = vld [vmem:[#allocation7 + $0x40] sm:$0xff]
    %v121 = vld [vmem:[#allocation7 + $0x48] sm:$0xff]
    %v122 = vld [vmem:[#allocation7 + $0x50] sm:$0xff]
    %v123 = vld [vmem:[#allocation7 + $0x58] sm:$0xff]
    %v124 = vld [vmem:[#allocation7 + $0x60] sm:$0xff]
    %v125 = vld [vmem:[#allocation7 + $0x68] sm:$0xff]
    %v126 = vld [vmem:[#allocation7 + $0x70] sm:$0xff]
    %v127 = vld [vmem:[#allocation7 + $0x78] sm:$0xff]
    %v128 = vld [vmem:[#allocation7 + $0x80] sm:$0xff]
    %v129 = vld [vmem:[#allocation7 + $0x88] sm:$0xff]
    %v130 = vld [vmem:[#allocation7 + $0x90] sm:$0xff]
    %v131 = vld [vmem:[#allocation7 + $0x98] sm:$0xff]
    %v132 = vld [vmem:[#allocation7 + $0xa0] sm:$0xff]
    %v133 = vld [vmem:[#allocation7 + $0xa8] sm:$0xff]
    %v134 = vld [vmem:[#allocation7 + $0xb0] sm:$0xff]
    %v135 = vld [vmem:[#allocation7 + $0xb8] sm:$0xff]
    %v136 = vld [vmem:[#allocation7 + $0xc0] sm:$0xff]
    %v137 = vld [vmem:[#allocation7 + $0xc8] sm:$0xff]
    %v138 = vld [vmem:[#allocation7 + $0xd0] sm:$0xff]
    %v139 = vld [vmem:[#allocation7 + $0xd8] sm:$0xff]
    %v140 = vld [vmem:[#allocation7 + $0xe0] sm:$0xff]
    %v141 = vld [vmem:[#allocation7 + $0xe8] sm:$0xff]
    %v142 = vld [vmem:[#allocation7 + $0xf0] sm:$0xff]
    %v143 = vld [vmem:[#allocation7 + $0xf8] sm:$0xff]
    %144 = vmatprep.subr.mxu0 %v143
    %145 = vmatpush1.msra.mxu0 %v142
    %146 = vmatprep.subr.mxu0 %v141
    %147 = vmatpush1.msra.mxu0 %v140
    %148 = vmatprep.subr.mxu0 %v139
    %149 = vmatpush1.msra.mxu0 %v138
    %150 = vmatprep.subr.mxu0 %v137
    %151 = vmatpush1.msra.mxu0 %v136
    %152 = vmatprep.subr.mxu0 %v135
    %153 = vmatpush1.msra.mxu0 %v134
    %154 = vmatprep.subr.mxu0 %v133
    %155 = vmatpush1.msra.mxu0 %v132
    %156 = vmatprep.subr.mxu0 %v131
    %157 = vmatpush1.msra.mxu0 %v130
    %158 = vmatprep.subr.mxu0 %v129
    %159 = vmatpush1.msra.mxu0 %v128
    %160 = vmatprep.subr.mxu0 %v127
    %161 = vmatpush1.msra.mxu0 %v126
    %162 = vmatprep.subr.mxu0 %v125
    %163 = vmatpush1.msra.mxu0 %v124
    %164 = vmatprep.subr.mxu0 %v123
    %165 = vmatpush1.msra.mxu0 %v122
    %166 = vmatprep.subr.mxu0 %v121
    %167 = vmatpush1.msra.mxu0 %v120
    %168 = vmatprep.subr.mxu0 %v119
    %169 = vmatpush1.msra.mxu0 %v118
    %170 = vmatprep.subr.mxu0 %v117
    %171 = vmatpush1.msra.mxu0 %v116
    %172 = vmatprep.subr.mxu0 %v115
    %173 = vmatpush1.msra.mxu0 %v114
    %174 = vmatprep.subr.mxu0 %v113
    %175 = vmatpush1.msra.mxu0 %v112
    %176 = vmatprep.subr.mxu0 0.0
    %177 = vmatpush2.msra.mxu0 0.0
    %178 = vmatprep.subr.mxu0 0.0
    %179 = vmatpush2.msra.mxu0 0.0
    %180 = vmatprep.subr.mxu0 0.0
    %181 = vmatpush2.msra.mxu0 0.0
    %182 = vmatprep.subr.mxu0 0.0
    %183 = vmatpush2.msra.mxu0 0.0
    %184 = vmatprep.subr.mxu0 0.0
    %185 = vmatpush2.msra.mxu0 0.0
    %186 = vmatprep.subr.mxu0 0.0
    %187 = vmatpush2.msra.mxu0 0.0
    %188 = vmatprep.subr.mxu0 0.0
    %189 = vmatpush2.msra.mxu0 0.0
    %190 = vmatprep.subr.mxu0 0.0
    %191 = vmatpush2.msra.mxu0 0.0
    %192 = vmatprep.subr.mxu0 0.0
    %193 = vmatpush2.msra.mxu0 0.0
    %194 = vmatprep.subr.mxu0 0.0
    %195 = vmatpush2.msra.mxu0 0.0
    %196 = vmatprep.subr.mxu0 0.0
    %197 = vmatpush2.msra.mxu0 0.0
    %198 = vmatprep.subr.mxu0 0.0
    %199 = vmatpush2.msra.mxu0 0.0
    %200 = vmatprep.subr.mxu0 0.0
    %201 = vmatpush2.msra.mxu0 0.0
    %202 = vmatprep.subr.mxu0 0.0
    %203 = vmatpush2.msra.mxu0 0.0
    %204 = vmatprep.subr.mxu0 0.0
    %205 = vmatpush2.msra.mxu0 0.0
    %206 = vmatprep.subr.mxu0 0.0
    %207 = vmatpush2.msra.mxu0 0.0
    %208 = vmatprep.mubr.f32.mxu0 0.0
    %209 = vmatmul.mubr.f32.gmra.mxu0 %v110
    %v210 = vpop.f32.mrf.mxu0
    %v211 = vadd.f32 0.0, %v210
    %v212 = vpop.f32.mrf.mxu0
    %v213 = vadd.f32 0.0, %v212
    %214 = vmatprep.mubr.f32.mxu0 0.0
    %215 = vmatmul.mubr.f32.gmra.mxu0 %v111
    %v216 = vpop.f32.mrf.mxu0
    %v217 = vadd.f32 0.0, %v216
    %v218 = vpop.f32.mrf.mxu0
    %v219 = vadd.f32 0.0, %v218
    %220 = vdwg.mxu0
    %v221 = vld [vmem:[#allocation9] sm:$0xff]
    %v222 = vld [vmem:[#allocation9 + $0x8] sm:$0xff]
    %v223 = vld [vmem:[#allocation9 + $0x10] sm:$0xff]
    %v224 = vld [vmem:[#allocation9 + $0x18] sm:$0xff]
    %v225 = vld [vmem:[#allocation9 + $0x20] sm:$0xff]
    %v226 = vld [vmem:[#allocation9 + $0x28] sm:$0xff]
    %v227 = vld [vmem:[#allocation9 + $0x30] sm:$0xff]
    %v228 = vld [vmem:[#allocation9 + $0x38] sm:$0xff]
    %v229 = vld [vmem:[#allocation9 + $0x40] sm:$0xff]
    %v230 = vld [vmem:[#allocation9 + $0x48] sm:$0xff]
    %v231 = vld [vmem:[#allocation9 + $0x50] sm:$0xff]
    %v232 = vld [vmem:[#allocation9 + $0x58] sm:$0xff]
    %v233 = vld [vmem:[#allocation9 + $0x60] sm:$0xff]
    %v234 = vld [vmem:[#allocation9 + $0x68] sm:$0xff]
    %v235 = vld [vmem:[#allocation9 + $0x70] sm:$0xff]
    %v236 = vld [vmem:[#allocation9 + $0x78] sm:$0xff]
    %v237 = vld [vmem:[#allocation9 + $0x80] sm:$0xff]
    %v238 = vld [vmem:[#allocation9 + $0x88] sm:$0xff]
    %v239 = vld [vmem:[#allocation9 + $0x90] sm:$0xff]
    %v240 = vld [vmem:[#allocation9 + $0x98] sm:$0xff]
    %v241 = vld [vmem:[#allocation9 + $0xa0] sm:$0xff]
    %v242 = vld [vmem:[#allocation9 + $0xa8] sm:$0xff]
    %v243 = vld [vmem:[#allocation9 + $0xb0] sm:$0xff]
    %v244 = vld [vmem:[#allocation9 + $0xb8] sm:$0xff]
    %v245 = vld [vmem:[#allocation9 + $0xc0] sm:$0xff]
    %v246 = vld [vmem:[#allocation9 + $0xc8] sm:$0xff]
    %v247 = vld [vmem:[#allocation9 + $0xd0] sm:$0xff]
    %v248 = vld [vmem:[#allocation9 + $0xd8] sm:$0xff]
    %v249 = vld [vmem:[#allocation9 + $0xe0] sm:$0xff]
    %v250 = vld [vmem:[#allocation9 + $0xe8] sm:$0xff]
    %v251 = vld [vmem:[#allocation9 + $0xf0] sm:$0xff]
    %v252 = vld [vmem:[#allocation9 + $0xf8] sm:$0xff]
    %253 = vmatprep.subr.mxu0 %v252
    %254 = vmatpush1.msra.mxu0 %v251
    %255 = vmatprep.subr.mxu0 %v250
    %256 = vmatpush1.msra.mxu0 %v249
    %257 = vmatprep.subr.mxu0 %v248
    %258 = vmatpush1.msra.mxu0 %v247
    %259 = vmatprep.subr.mxu0 %v246
    %260 = vmatpush1.msra.mxu0 %v245
    %261 = vmatprep.subr.mxu0 %v244
    %262 = vmatpush1.msra.mxu0 %v243
    %263 = vmatprep.subr.mxu0 %v242
    %264 = vmatpush1.msra.mxu0 %v241
    %265 = vmatprep.subr.mxu0 %v240
    %266 = vmatpush1.msra.mxu0 %v239
    %267 = vmatprep.subr.mxu0 %v238
    %268 = vmatpush1.msra.mxu0 %v237
    %269 = vmatprep.subr.mxu0 %v236
    %270 = vmatpush1.msra.mxu0 %v235
    %271 = vmatprep.subr.mxu0 %v234
    %272 = vmatpush1.msra.mxu0 %v233
    %273 = vmatprep.subr.mxu0 %v232
    %274 = vmatpush1.msra.mxu0 %v231
    %275 = vmatprep.subr.mxu0 %v230
    %276 = vmatpush1.msra.mxu0 %v229
    %277 = vmatprep.subr.mxu0 %v228
    %278 = vmatpush1.msra.mxu0 %v227
    %279 = vmatprep.subr.mxu0 %v226
    %280 = vmatpush1.msra.mxu0 %v225
    %281 = vmatprep.subr.mxu0 %v224
    %282 = vmatpush1.msra.mxu0 %v223
    %283 = vmatprep.subr.mxu0 %v222
    %284 = vmatpush1.msra.mxu0 %v221
    %285 = vmatprep.subr.mxu0 0.0
    %286 = vmatpush2.msra.mxu0 0.0
    %287 = vmatprep.subr.mxu0 0.0
    %288 = vmatpush2.msra.mxu0 0.0
    %289 = vmatprep.subr.mxu0 0.0
    %290 = vmatpush2.msra.mxu0 0.0
    %291 = vmatprep.subr.mxu0 0.0
    %292 = vmatpush2.msra.mxu0 0.0
    %293 = vmatprep.subr.mxu0 0.0
    %294 = vmatpush2.msra.mxu0 0.0
    %295 = vmatprep.subr.mxu0 0.0
    %296 = vmatpush2.msra.mxu0 0.0
    %297 = vmatprep.subr.mxu0 0.0
    %298 = vmatpush2.msra.mxu0 0.0
    %299 = vmatprep.subr.mxu0 0.0
    %300 = vmatpush2.msra.mxu0 0.0
    %301 = vmatprep.subr.mxu0 0.0
    %302 = vmatpush2.msra.mxu0 0.0
    %303 = vmatprep.subr.mxu0 0.0
    %304 = vmatpush2.msra.mxu0 0.0
    %305 = vmatprep.subr.mxu0 0.0
    %306 = vmatpush2.msra.mxu0 0.0
    %307 = vmatprep.subr.mxu0 0.0
    %308 = vmatpush2.msra.mxu0 0.0
    %309 = vmatprep.subr.mxu0 0.0
    %310 = vmatpush2.msra.mxu0 0.0
    %311 = vmatprep.subr.mxu0 0.0
    %312 = vmatpush2.msra.mxu0 0.0
    %313 = vmatprep.subr.mxu0 0.0
    %314 = vmatpush2.msra.mxu0 0.0
    %315 = vmatprep.subr.mxu0 0.0
    %316 = vmatpush2.msra.mxu0 0.0
    %317 = vmatprep.mubr.f32.mxu0 0.0
    %318 = vmatmul.mubr.f32.gmra.mxu0 %v110
    %v319 = vpop.f32.mrf.mxu0
    %v320 = vadd.f32 0.0, %v319
    %v321 = vpop.f32.mrf.mxu0
    %v322 = vadd.f32 0.0, %v321
    %323 = vmatprep.mubr.f32.mxu0 0.0
    %324 = vmatmul.mubr.f32.gmra.mxu0 %v111
    %v325 = vpop.f32.mrf.mxu0
    %v326 = vadd.f32 0.0, %v325
    %v327 = vpop.f32.mrf.mxu0
    %v328 = vadd.f32 0.0, %v327
    %329 = vdwg.mxu0
    %v330 = vxor.u32 %v211, 2147483648
    %v331 = vxor.u32 %v213, 2147483648
    %v332 = vxor.u32 %v217, 2147483648
    %v333 = vxor.u32 %v219, 2147483648
    %v334 = vmul.f32 %v330, 1.442695
    %v335 = vpow.pop %v334
    %v336 = vmul.f32 %v331, 1.442695
    %v337 = vpow.pop %v336
    %v338 = vmul.f32 %v332, 1.442695
    %v339 = vpow.pop %v338
    %v340 = vmul.f32 %v333, 1.442695
    %v341 = vpow.pop %v340
    %v342 = vadd.f32 %v335, 1.0
    %v343 = vadd.f32 %v337, 1.0
    %v344 = vadd.f32 %v339, 1.0
    %v345 = vadd.f32 %v341, 1.0
    %v346 = vrcp.pop %v342
    %v347 = vmul.f32 1.0, %v346
    %v348 = vrcp.pop %v343
    %v349 = vmul.f32 1.0, %v348
    %v350 = vrcp.pop %v344
    %v351 = vmul.f32 1.0, %v350
    %v352 = vrcp.pop %v345
    %v353 = vmul.f32 1.0, %v352
    %v354 = vmul.f32 %v211, %v347
    %v355 = vmul.f32 %v213, %v349
    %v356 = vmul.f32 %v217, %v351
    %v357 = vmul.f32 %v219, %v353
    %v358 = vmul.f32 %v354, %v320
    %v359 = vmul.f32 %v355, %v322
    %v360 = vmul.f32 %v356, %v326
    %v361 = vmul.f32 %v357, %v328
    %v362 = vld [vmem:[#allocation3] sm:$0xff]
    %v363 = vld [vmem:[#allocation3 + $0x8] sm:$0xff]
    %v364 = vld [vmem:[#allocation10] sm:$0xff]
    %v365 = vld [vmem:[#allocation10 + $0x8] sm:$0xff]
    %v366 = vld [vmem:[#allocation10 + $0x10] sm:$0xff]
    %v367 = vld [vmem:[#allocation10 + $0x18] sm:$0xff]
    %v368 = vld [vmem:[#allocation10 + $0x20] sm:$0xff]
    %v369 = vld [vmem:[#allocation10 + $0x28] sm:$0xff]
    %v370 = vld [vmem:[#allocation10 + $0x30] sm:$0xff]
    %v371 = vld [vmem:[#allocation10 + $0x38] sm:$0xff]
    %v372 = vld [vmem:[#allocation10 + $0x40] sm:$0xff]
    %v373 = vld [vmem:[#allocation10 + $0x48] sm:$0xff]
    %v374 = vld [vmem:[#allocation10 + $0x50] sm:$0xff]
    %v375 = vld [vmem:[#allocation10 + $0x58] sm:$0xff]
    %v376 = vld [vmem:[#allocation10 + $0x60] sm:$0xff]
    %v377 = vld [vmem:[#allocation10 + $0x68] sm:$0xff]
    %v378 = vld [vmem:[#allocation10 + $0x70] sm:$0xff]
    %v379 = vld [vmem:[#allocation10 + $0x78] sm:$0xff]
    %v380 = vld [vmem:[#allocation10 + $0x80] sm:$0xff]
    %v381 = vld [vmem:[#allocation10 + $0x88] sm:$0xff]
    %v382 = vld [vmem:[#allocation10 + $0x90] sm:$0xff]
    %v383 = vld [vmem:[#allocation10 + $0x98] sm:$0xff]
    %v384 = vld [vmem:[#allocation10 + $0xa0] sm:$0xff]
    %v385 = vld [vmem:[#allocation10 + $0xa8] sm:$0xff]
    %v386 = vld [vmem:[#allocation10 + $0xb0] sm:$0xff]
    %v387 = vld [vmem:[#allocation10 + $0xb8] sm:$0xff]
    %v388 = vld [vmem:[#allocation10 + $0xc0] sm:$0xff]
    %v389 = vld [vmem:[#allocation10 + $0xc8] sm:$0xff]
    %v390 = vld [vmem:[#allocation10 + $0xd0] sm:$0xff]
    %v391 = vld [vmem:[#allocation10 + $0xd8] sm:$0xff]
    %v392 = vld [vmem:[#allocation10 + $0xe0] sm:$0xff]
    %v393 = vld [vmem:[#allocation10 + $0xe8] sm:$0xff]
    %v394 = vld [vmem:[#allocation10 + $0xf0] sm:$0xff]
    %v395 = vld [vmem:[#allocation10 + $0xf8] sm:$0xff]
    %396 = vmatprep.subr.mxu0 0.0
    %397 = vmatpush1.msra.mxu0 %v379
    %398 = vmatprep.subr.mxu0 0.0
    %399 = vmatpush1.msra.mxu0 %v378
    %400 = vmatprep.subr.mxu0 0.0
    %401 = vmatpush1.msra.mxu0 %v377
    %402 = vmatprep.subr.mxu0 0.0
    %403 = vmatpush1.msra.mxu0 %v376
    %404 = vmatprep.subr.mxu0 0.0
    %405 = vmatpush1.msra.mxu0 %v375
    %406 = vmatprep.subr.mxu0 0.0
    %407 = vmatpush1.msra.mxu0 %v374
    %408 = vmatprep.subr.mxu0 0.0
    %409 = vmatpush1.msra.mxu0 %v373
    %410 = vmatprep.subr.mxu0 0.0
    %411 = vmatpush1.msra.mxu0 %v372
    %412 = vmatprep.subr.mxu0 0.0
    %413 = vmatpush1.msra.mxu0 %v371
    %414 = vmatprep.subr.mxu0 0.0
    %415 = vmatpush1.msra.mxu0 %v370
    %416 = vmatprep.subr.mxu0 0.0
    %417 = vmatpush1.msra.mxu0 %v369
    %418 = vmatprep.subr.mxu0 0.0
    %419 = vmatpush1.msra.mxu0 %v368
    %420 = vmatprep.subr.mxu0 0.0
    %421 = vmatpush1.msra.mxu0 %v367
    %422 = vmatprep.subr.mxu0 0.0
    %423 = vmatpush1.msra.mxu0 %v366
    %424 = vmatprep.subr.mxu0 0.0
    %425 = vmatpush1.msra.mxu0 %v365
    %426 = vmatprep.subr.mxu0 0.0
    %427 = vmatpush1.msra.mxu0 %v364
    %428 = vmatprep.subr.mxu0 0.0
    %429 = vmatpush2.msra.mxu0 %v395
    %430 = vmatprep.subr.mxu0 0.0
    %431 = vmatpush2.msra.mxu0 %v394
    %432 = vmatprep.subr.mxu0 0.0
    %433 = vmatpush2.msra.mxu0 %v393
    %434 = vmatprep.subr.mxu0 0.0
    %435 = vmatpush2.msra.mxu0 %v392
    %436 = vmatprep.subr.mxu0 0.0
    %437 = vmatpush2.msra.mxu0 %v391
    %438 = vmatprep.subr.mxu0 0.0
    %439 = vmatpush2.msra.mxu0 %v390
    %440 = vmatprep.subr.mxu0 0.0
    %441 = vmatpush2.msra.mxu0 %v389
    %442 = vmatprep.subr.mxu0 0.0
    %443 = vmatpush2.msra.mxu0 %v388
    %444 = vmatprep.subr.mxu0 0.0
    %445 = vmatpush2.msra.mxu0 %v387
    %446 = vmatprep.subr.mxu0 0.0
    %447 = vmatpush2.msra.mxu0 %v386
    %448 = vmatprep.subr.mxu0 0.0
    %449 = vmatpush2.msra.mxu0 %v385
    %450 = vmatprep.subr.mxu0 0.0
    %451 = vmatpush2.msra.mxu0 %v384
    %452 = vmatprep.subr.mxu0 0.0
    %453 = vmatpush2.msra.mxu0 %v383
    %454 = vmatprep.subr.mxu0 0.0
    %455 = vmatpush2.msra.mxu0 %v382
    %456 = vmatprep.subr.mxu0 0.0
    %457 = vmatpush2.msra.mxu0 %v381
    %458 = vmatprep.subr.mxu0 0.0
    %459 = vmatpush2.msra.mxu0 %v380
    %460 = vmatprep.mubr.f32.mxu0 %v359
    %461 = vmatmul.mubr.f32.gmra.mxu0 %v358
    %v462 = vpop.f32.mrf.mxu0
    %v463 = vadd.f32 0.0, %v462
    %v464 = vpop.f32.mrf.mxu0
    %465 = vmatprep.mubr.f32.mxu0 %v361
    %466 = vmatmul.mubr.f32.gmra.mxu0 %v360
    %v467 = vpop.f32.mrf.mxu0
    %v468 = vadd.f32 0.0, %v467
    %v469 = vpop.f32.mrf.mxu0
    %470 = vdwg.mxu0
    %v471 = vadd.f32 %v362, %v463
    %v472 = vadd.f32 %v363, %v468
    %473 = vst [vmem:[#allocation3] sm:$0xff] %v471
    %474 = vst [vmem:[#allocation3 + $0x8] sm:$0xff] %v472
    // Predicated region
    $region42: #{tpu_custom_call.1} parent=1 // pred_check
      %p475 = pneg %p76
    $region43: #{tpu_custom_call.1} parent=1 // pred_check_branch
      %477 = sbr.rel (%p475) target = $region45
    $region44: #{tpu_custom_call.1} parent=1 // pred_region
      %v478 = vld [vmem:[#allocation3] sm:$0xff]
      %v479 = vld [vmem:[#allocation3 + $0x8] sm:$0xff]
      %480 = vst [vmem:[#allocation12] sm:$0xff] %v478
      %481 = vst [vmem:[#allocation12 + $0x8] sm:$0xff] %v479
    $region45: #{tpu_custom_call.1} parent=1 // pred_fallthru
      _
    // Predicated region
    $region46: #{tpu_custom_call.1} parent=1 // pred_check
      _
    $region47: #{tpu_custom_call.1} parent=1 // pred_check_branch
      %483 = sbr.rel (0) target = $region49
    $region48: #{tpu_custom_call.1} parent=1 // pred_region
      %s485 = ssub.s32 256, 256
      %486 = vsyncadd [#allocation6], %s485
      %s487 = sshll.u32 [#allocation12], 4
      %s488 = int_to_ptr.vmem [resolvable:$true] %s487
      %493 = dma.vmem_to_hbm [thread:$0]  %s488, 256, %s5, [#allocation6], 128, 128, 8
    $region49: #{tpu_custom_call.1} parent=1 // pred_fallthru
      _
    // Predicated region
    $region50: #{tpu_custom_call.1} parent=1 // pred_check
      _
    $region51: #{tpu_custom_call.1} parent=1 // pred_check_branch
      %495 = sbr.rel (0) target = $region53
    $region52: #{tpu_custom_call.1} parent=1 // pred_region
      %496 = dma.done [#allocation6], 256
    $region53: #{tpu_custom_call.1} parent=1 // pred_fallthru
      _
    %497 = vsyncpa [#allocation5], 1
    %498 = vsyncpa [#allocation8], 1
    %499 = vsyncpa [#allocation11], 1
    %500 = vsyncpa [#allocation6], 1

</llo_original>
